<compile_context>
chip_gen: v7x
topology: tpu7x:2x2x1
jax: 0.10.0
libtpu: 0.0.40
codegen_flags: <defaults>
</compile_context>

<pallas_src>
import functools

import jax
import jax.numpy as jnp
from jax.experimental import pallas as pl
from jax.experimental.pallas import tpu as pltpu


# ---------------------------------------------------------------------------
# helpers
# ---------------------------------------------------------------------------
def _pick_tile(n, target, granule):
    """Largest multiple of `granule` <= target that divides n, else n (full dim)."""
    if n <= target:
        return n
    t = (target // granule) * granule
    while t > 0 and n % t != 0:
        t -= granule
    return t if t > 0 else n


_VMEM_LIMIT = 64 * 1024 * 1024  # generous scoped-VMEM cap; actual use is far below


# ---------------------------------------------------------------------------
# Kernel A: batched per-relation projection   hw[m] = h_src[m] @ W[m]
#   grid = (M, N_src // tn)
# ---------------------------------------------------------------------------
def _proj_kernel(h_ref, w_ref, o_ref):
    o_ref[0] = jnp.dot(h_ref[0], w_ref[0],
                       preferred_element_type=jnp.float32).astype(o_ref.dtype)


def batched_projection(h_stack, w_stack, *, tile_n=256):
    m, n_src, d_in = h_stack.shape
    d_out = w_stack.shape[-1]
    tn = _pick_tile(n_src, tile_n, 8)
    grid = (m, n_src // tn)
    return pl.pallas_call(
        _proj_kernel,
        out_shape=jax.ShapeDtypeStruct((m, n_src, d_out), jnp.bfloat16),
        grid_spec=pltpu.PrefetchScalarGridSpec(
            num_scalar_prefetch=0,
            grid=grid,
            in_specs=[
                pl.BlockSpec((1, tn, d_in), lambda r, i: (r, i, 0)),
                pl.BlockSpec((1, d_in, d_out), lambda r, i: (r, 0, 0)),
            ],
            out_specs=pl.BlockSpec((1, tn, d_out), lambda r, i: (r, i, 0)),
        ),
        compiler_params=pltpu.CompilerParams(
            dimension_semantics=("parallel", "parallel"),
            vmem_limit_bytes=_VMEM_LIMIT),
    )(h_stack, w_stack)


# ---------------------------------------------------------------------------
# Kernel B: batched adjacency matmul with fused row-normalization
#   z[m] = (A_m @ hw[m]) / clip(rowsum(A_m), 1, inf)
#   grid = (M, N_dst // tm, N_src // tk)   (k = reduction axis, last)
# ---------------------------------------------------------------------------
def _spmm_kernel(adj_ref, hw_ref, z_ref, acc_ref, deg_ref):
    k = pl.program_id(2)

    @pl.when(k == 0)
    def _():
        acc_ref[...] = jnp.zeros_like(acc_ref)
        deg_ref[...] = jnp.zeros_like(deg_ref)

    a = adj_ref[0]                                                    # (tm, tk) bf16
    acc_ref[...] += jnp.dot(a, hw_ref[0], preferred_element_type=jnp.float32)
    deg_ref[...] += jnp.sum(a.astype(jnp.float32), axis=-1, keepdims=True)

    @pl.when(k == pl.num_programs(2) - 1)
    def _():
        inv = pl.reciprocal(jnp.maximum(deg_ref[...], 1.0), approx=True)
        z_ref[0] = (acc_ref[...] * inv).astype(z_ref.dtype)


def batched_rel_conv(adj_stack, hw, *, tile_m=256, tile_k=512):
    m, n_dst, n_src = adj_stack.shape
    d_out = hw.shape[-1]
    tm = _pick_tile(n_dst, tile_m, 8)
    tk = _pick_tile(n_src, tile_k, 128)
    grid = (m, n_dst // tm, n_src // tk)
    return pl.pallas_call(
        _spmm_kernel,
        out_shape=jax.ShapeDtypeStruct((m, n_dst, d_out), jnp.float32),
        grid_spec=pltpu.PrefetchScalarGridSpec(
            num_scalar_prefetch=0,
            grid=grid,
            in_specs=[
                pl.BlockSpec((1, tm, tk), lambda r, i, k: (r, i, k)),
                pl.BlockSpec((1, tk, d_out), lambda r, i, k: (r, k, 0)),
            ],
            out_specs=pl.BlockSpec((1, tm, d_out), lambda r, i, k: (r, i, 0)),
            scratch_shapes=[
                pltpu.VMEM((tm, d_out), jnp.float32),
                pltpu.VMEM((tm, 1), jnp.float32),
            ],
        ),
        compiler_params=pltpu.CompilerParams(
            dimension_semantics=("parallel", "parallel", "arbitrary"),
            vmem_limit_bytes=_VMEM_LIMIT),
    )(adj_stack, hw)


# ---------------------------------------------------------------------------
# Kernel C1: semantic-attention logits    w_m = mean_n( tanh(z[m] @ W1 + b1) . w2 )
#   grid = (N // tn,)  — reduction over node tiles, output (M, 1) is resident
# ---------------------------------------------------------------------------
def _attn_logits_kernel(z_ref, w1_ref, b1_ref, w2_ref, logit_ref, *, inv_n):
    i = pl.program_id(0)

    @pl.when(i == 0)
    def _():
        logit_ref[...] = jnp.zeros_like(logit_ref)

    w1 = w1_ref[...]
    b1 = b1_ref[...]
    w2 = w2_ref[...]                                                  # (1, H)

    parts = []
    for m in range(z_ref.shape[0]):                                   # static unroll
        p = jnp.tanh(jnp.dot(z_ref[m], w1,
                             preferred_element_type=jnp.float32) + b1)   # (tn, H)
        # (tn, H) @ (H, 1) replaced by VPU multiply + full reduce (keeps MXU free)
        parts.append(jnp.sum(p * w2, keepdims=True))                  # (1, 1)
    logit_ref[...] += jnp.concatenate(parts, axis=0)                  # (M, 1)

    @pl.when(i == pl.num_programs(0) - 1)
    def _():
        logit_ref[...] *= inv_n


def attention_logits(z, w1, b1, w2row, *, tile_n=256):
    m, n, d = z.shape
    h = w1.shape[1]
    tn = _pick_tile(n, tile_n, 8)
    grid = (n // tn,)
    kernel = functools.partial(_attn_logits_kernel, inv_n=1.0 / n)
    return pl.pallas_call(
        kernel,
        out_shape=jax.ShapeDtypeStruct((m, 1), jnp.float32),
        grid_spec=pltpu.PrefetchScalarGridSpec(
            num_scalar_prefetch=0,
            grid=grid,
            in_specs=[
                pl.BlockSpec((m, tn, d), lambda i: (0, i, 0)),
                pl.BlockSpec((d, h), lambda i: (0, 0)),
                pl.BlockSpec((1, h), lambda i: (0, 0)),
                pl.BlockSpec((1, h), lambda i: (0, 0)),
            ],
            out_specs=pl.BlockSpec((m, 1), lambda i: (0, 0)),
        ),
        compiler_params=pltpu.CompilerParams(
            dimension_semantics=("arbitrary",),
            vmem_limit_bytes=_VMEM_LIMIT),
    )(z, w1, b1, w2row)


# ---------------------------------------------------------------------------
# Kernel C2: streaming weighted sum   out = sum_m softmax_m(w)_m * z[m]
#   grid = (N // tn,)  — pure streaming pass (softmax over M recomputed per tile,
#   it is a handful of VPU/EUP ops and keeps everything inside the kernel)
# ---------------------------------------------------------------------------
def _attn_combine_kernel(logit_ref, z_ref, o_ref):
    m = z_ref.shape[0]
    w = logit_ref[...]                                                # (M, 1)
    ws = [w[r:r + 1, 0:1] for r in range(m)]                          # (1,1) each
    mx = functools.reduce(jnp.maximum, ws)
    es = [jnp.exp(s - mx) for s in ws]
    denom = functools.reduce(lambda a, b: a + b, es)
    inv = 1.0 / denom

    acc = (es[0] * inv) * z_ref[0]
    for r in range(1, m):
        acc = acc + (es[r] * inv) * z_ref[r]
    o_ref[...] = acc.astype(o_ref.dtype)


def attention_combine(logits, z, *, tile_n=256):
    m, n, d = z.shape
    tn = _pick_tile(n, tile_n, 8)
    grid = (n // tn,)
    return pl.pallas_call(
        _attn_combine_kernel,
        out_shape=jax.ShapeDtypeStruct((n, d), jnp.float32),
        grid_spec=pltpu.PrefetchScalarGridSpec(
            num_scalar_prefetch=0,
            grid=grid,
            in_specs=[
                pl.BlockSpec((m, 1), lambda i: (0, 0)),
                pl.BlockSpec((m, tn, d), lambda i: (0, i, 0)),
            ],
            out_specs=pl.BlockSpec((tn, d), lambda i: (i, 0)),
        ),
        compiler_params=pltpu.CompilerParams(
            dimension_semantics=("parallel",),
            vmem_limit_bytes=_VMEM_LIMIT),
    )(logits, z)


# ---------------------------------------------------------------------------
# RelationConv wrapper (plain-JAX glue around the Pallas kernels)
# ---------------------------------------------------------------------------
class RelationConvPallas:
    """HeteroGraphConv({rel: GraphConv}) aggregated with SemanticAttention."""

    def __init__(self, rel_names, dim_in, dim_out, hidden_size=128, seed=0,
                 tile_m=256, tile_k=512, tile_n=256):
        key = jax.random.PRNGKey(seed)
        keys = jax.random.split(key, len(rel_names) + 2)
        self.rel_names = list(rel_names)
        self.dim_out = dim_out
        self.tile_m, self.tile_k, self.tile_n = tile_m, tile_k, tile_n
        # per-relation conv weight (dim_in, dim_out), bias=False
        self.rel_w = {
            rel: (jax.random.normal(keys[i], (dim_in, dim_out), jnp.float32)
                  * (1.0 / jnp.sqrt(dim_in)))
            for i, rel in enumerate(self.rel_names)
        }
        # SemanticAttention: Linear(dim_out, hidden) + Tanh + Linear(hidden, 1, bias=False)
        self.att_w1 = (jax.random.normal(keys[-2], (dim_out, hidden_size), jnp.float32)
                       * (1.0 / jnp.sqrt(dim_out)))
        self.att_b1 = jnp.zeros((1, hidden_size), jnp.float32)
        self.att_w2row = (jax.random.normal(keys[-1], (1, hidden_size), jnp.float32)
                          * (1.0 / jnp.sqrt(hidden_size)))

    def __call__(self, g, h_dict):
        """g: dict rel -> (srctype, dsttype, adj[N_dst, N_src]); h_dict: ntype -> (N, dim_in)."""
        # group relations per destination type (HeteroGraphConv aggregate semantics)
        groups = {}
        for rel in self.rel_names:
            if rel not in g:
                continue
            srctype, dsttype, adj = g[rel]
            groups.setdefault(dsttype, []).append((rel, srctype, adj))

        out_dict = {}
        for dsttype, items in groups.items():
            shape0 = items[0][2].shape
            # TODO(synk): relations whose source types have a different node
            # count are not batched here (demo / common case: same shape).
            assert all(a.shape == shape0 for _, _, a in items), \
                "batched path requires equally shaped adjacencies per dst type"

            adj_stack = jnp.stack([a for _, _, a in items]).astype(jnp.bfloat16)
            h_stack = jnp.stack([h_dict[s] for _, s, _ in items]).astype(jnp.bfloat16)
            w_stack = jnp.stack([self.rel_w[r] for r, _, _ in items]).astype(jnp.bfloat16)

            hw = batched_projection(h_stack, w_stack, tile_n=self.tile_n)
            z = batched_rel_conv(adj_stack, hw,
                                 tile_m=self.tile_m, tile_k=self.tile_k)
            logits = attention_logits(z, self.att_w1, self.att_b1,
                                      self.att_w2row, tile_n=self.tile_n)
            out_dict[dsttype] = attention_combine(logits, z, tile_n=self.tile_n)
        return out_dict


# ---------------------------------------------------------------------------
if __name__ == "__main__":
    N = 256           # nodes (single node type) — exercises 2x2 dst/src tiling
    DIM_IN = 64
    DIM_OUT = 64
    HIDDEN = 128
    rel_names = ["rel_a", "rel_b", "rel_c"]

    key = jax.random.PRNGKey(0)
    k_h, k_a = jax.random.split(key)
    h = jax.random.normal(k_h, (N, DIM_IN), jnp.float32)

    a_keys = jax.random.split(k_a, len(rel_names))
    g = {}
    for rel, ak in zip(rel_names, a_keys):
        adj = (jax.random.uniform(ak, (N, N)) > 0.7).astype(jnp.float32)
        g[rel] = ("node", "node", adj)

    model = RelationConvPallas(rel_names, DIM_IN, DIM_OUT, hidden_size=HIDDEN,
                               seed=0, tile_m=128, tile_k=128, tile_n=128)
    out_dict = model(g, {"node": h})
    out = jax.block_until_ready(out_dict["node"])
    assert out.shape == (N, DIM_OUT)
    assert bool(jnp.all(jnp.isfinite(out)))
    print("KERNEL_OK")
</pallas_src>

<mosaic_0001>
module attributes {stable_mosaic.version = 11 : i64} {
  func.func @_proj_kernel(%arg0: i32, %arg1: i32, %arg2: memref<1x128x64xbf16, #tpu.memory_space<vmem>>, %arg3: memref<1x64x64xbf16, #tpu.memory_space<vmem>>, %arg4: memref<1x128x64xbf16, #tpu.memory_space<vmem>>) attributes {dimension_semantics = [#tpu.dimension_semantics<parallel>, #tpu.dimension_semantics<parallel>], iteration_bounds = array<i64: 3, 2>, scalar_prefetch = 0 : i64, scratch_operands = 0 : i64, tpu.core_type = #tpu.core_type<tc>, window_params = [{transform_indices = @transform_0, window_bounds = array<i64: 1, 128, 64>}, {transform_indices = @transform_1, window_bounds = array<i64: 1, 64, 64>}, {transform_indices = @transform_2, window_bounds = array<i64: 1, 128, 64>}]} {
    %c0 = arith.constant 0 : index
    %c0_0 = arith.constant 0 : index
    %c0_1 = arith.constant 0 : index
    %0 = vector.load %arg2[%c0, %c0_0, %c0_1] : memref<1x128x64xbf16, #tpu.memory_space<vmem>>, vector<1x128x64xbf16>
    %1 = vector.shape_cast %0 : vector<1x128x64xbf16> to vector<128x64xbf16>
    %c0_2 = arith.constant 0 : index
    %c0_3 = arith.constant 0 : index
    %c0_4 = arith.constant 0 : index
    %2 = vector.load %arg3[%c0_2, %c0_3, %c0_4] : memref<1x64x64xbf16, #tpu.memory_space<vmem>>, vector<1x64x64xbf16>
    %3 = vector.shape_cast %2 : vector<1x64x64xbf16> to vector<64x64xbf16>
    %cst = arith.constant dense<0.000000e+00> : vector<128x64xf32>
    %4 = tpu.matmul %1, %3, %cst {dimension_numbers = #tpu.dot_dimension_numbers<[1], [0], [0], [1], [0, 0, 1, 1], [], []>} : vector<128x64xbf16>, vector<64x64xbf16>, vector<128x64xf32> -> vector<128x64xf32>
    %5 = arith.truncf %4 : vector<128x64xf32> to vector<128x64xbf16>
    %c0_5 = arith.constant 0 : index
    %c0_6 = arith.constant 0 : index
    %c0_7 = arith.constant 0 : index
    %6 = vector.load %arg4[%c0_5, %c0_6, %c0_7] : memref<1x128x64xbf16, #tpu.memory_space<vmem>>, vector<1x128x64xbf16>
    %7 = vector.shape_cast %6 : vector<1x128x64xbf16> to vector<128x64xbf16>
    %8 = vector.shape_cast %5 : vector<128x64xbf16> to vector<1x128x64xbf16>
    tpu.vector_store %arg4[%c0_5, %c0_6, %c0_7], %8 {strides = array<i32>} : memref<1x128x64xbf16, #tpu.memory_space<vmem>>, vector<1x128x64xbf16>,
    return
  }
  func.func @transform_0(%arg0: i32, %arg1: i32) -> (i32, i32, i32) {
    %c0_i32 = arith.constant 0 : i32
    %c0_i32_0 = arith.constant 0 : i32
    return %arg0, %arg1, %c0_i32 : i32, i32, i32
  }
  func.func @transform_1(%arg0: i32, %arg1: i32) -> (i32, i32, i32) {
    %c0_i32 = arith.constant 0 : i32
    %c0_i32_0 = arith.constant 0 : i32
    %c0_i32_1 = arith.constant 0 : i32
    return %arg0, %c0_i32, %c0_i32_0 : i32, i32, i32
  }
  func.func @transform_2(%arg0: i32, %arg1: i32) -> (i32, i32, i32) {
    %c0_i32 = arith.constant 0 : i32
    %c0_i32_0 = arith.constant 0 : i32
    return %arg0, %arg1, %c0_i32 : i32, i32, i32
  }
}

</mosaic_0001>

<llo_original>
// kernel: tpu_custom_call.1
$region0: #{tpu_custom_call.1}
  #allocation0 [shape = 'u32[]', space=smem, size = 0x4, offset = 0x4, fixed_abs, tag = 'smem constant byte address 0x4 - core index']
  #allocation1 [shape = 'u32[144,128]{1,0:T(1,128)}', space=vmem, size = 0x12000, scoped, tag = 'internal scratch']
  %s0 = inlined_call_operand.hbm [shape: bf16[3,256,64], index: 0, kind: input, shape index: {}]
  %s1 = inlined_call_operand.hbm [shape: bf16[3,64,64], index: 1, kind: input, shape index: {}]
  %s2 = inlined_call_operand.hbm [shape: bf16[3,256,64], index: 2, kind: output, shape index: {}]
  %s3 = sld [smem:[#allocation0]]
  $region49: #{tpu_custom_call.1} parent=0
    _
  %s5 = ssub.s32 1, %s3
  %s6 = scalar_select 0, %s5, %s3
  $region1: #{tpu_custom_call.1} parent=0
    #allocation2 [shape = 'u8[65536]{0}', space=vmem, size = 0x10000, scoped, tag = 'input window, operand 0']
    #allocation3 [shape = 's32[2]{0}', space=sflag, size = 0x8, scoped, tag = 'scoped memory for tpu_custom_call.1']
    #allocation4 [shape = 's32[2]{0}', space=sflag, size = 0x8, scoped, tag = 'scoped memory for tpu_custom_call.1']
    #allocation5 [shape = 'u8[32768]{0}', space=vmem, size = 0x8000, scoped, tag = 'input window, operand 1']
    #allocation6 [shape = 's32[2]{0}', space=sflag, size = 0x8, scoped, tag = 'scoped memory for tpu_custom_call.1']
    #allocation7 [shape = 'u8[65536]{0}', space=vmem, size = 0x10000, scoped, tag = 'output window, operand 0']
    %7 = vsyncpa [#allocation3], 0
    %s8 = scalar_lea.sflag [#allocation3], 1
    %9 = vsyncpa %s8, 0
    %10 = vsyncpa [#allocation6], 0
    %s11 = scalar_lea.sflag [#allocation6], 1
    %12 = vsyncpa %s11, 0
    %13 = vsyncpa [#allocation4], 0
    %s14 = scalar_lea.sflag [#allocation4], 1
    %15 = vsyncpa %s14, 0
    loop: start=0, step=1, limit=8
    $region2: #{tpu_custom_call.1} parent=1 // loop_pre_header
      _
    $region3: #{tpu_custom_call.1} parent=1 // loop_header
      %s17 = sphi 0, %s21
      %p18 = scmp.ge.s32.totalorder %s17, 8
      %s24 = sphi 0, %s36
      %s25 = sphi 0, %s32
      %s26 = sphi 0, %s24
      %s27 = sphi 0, %s25
      %s28 = sphi 0, %s26
      %s29 = sphi 0, %s27
      %s41 = sphi 0, %s43
      %s44 = sphi 0, %s41
      %s45 = sphi 0, %s44
      %s61 = sphi 0, %s45
      %s67 = sphi 0, %s69
      %s70 = sphi 0, %s67
      %s71 = sphi 0, %s70
      %s87 = sphi 0, %s71
      %s95 = sphi 0, %s97
      %s98 = sphi 0, %s95
      %s99 = sphi 0, %s98
      %s115 = sphi 0, %s99
    $region4: #{tpu_custom_call.1} parent=1 // loop_header_branch
      %20 = sbr.rel (%p18) target = $region8
    $region5: #{tpu_custom_call.1} parent=1 // loop_body
      %s22 = ssub.s32 %s17, 1
      %s23 = ssub.s32 %s17, 2
      %s30 = sadd.s32 1, %s25
      %p31 = scmp.ge.s32.totalorder %s30, 2
      %s32 = scalar_select %p31, 0, %s30
      %s33 = sadd.s32 1, %s24
      %s34 = scalar_select %p31, %s33, %s24
      %p35 = scmp.ge.s32.totalorder %s34, 3
      %s36 = scalar_select %p35, 0, %s34
      %s37 = ssub.s32 %s24, %s36
      %s38 = ssub.s32 %s25, %s32
      %s39 = sor.u32 %s37, %s38
      %p40 = scmp.eq.s32.totalorder %s39, 0
      %s42 = sadd.s32 %s41, 1
      %s43 = scalar_select %p40, %s41, %s42
      %p46 = pneg %p40
      %p47 = scmp.eq.s32.totalorder %s17, 5
      %p48 = por %p46, %p47
      %p49 = scmp.ne.s32.totalorder %s41, %s44
      %p50 = scmp.eq.s32.totalorder %s17, 0
      %p51 = por %p49, %p50
      %p52 = scmp.ne.s32.totalorder %s41, %s44
      %p53 = scmp.eq.s32.totalorder %s22, 5
      %p54 = por %p52, %p53
      %p55 = scmp.ne.s32.totalorder %s44, %s45
      %p56 = scmp.eq.s32.totalorder %s22, 0
      %p57 = por %p55, %p56
      %p58 = scmp.ne.s32.totalorder %s44, %s45
      %p59 = scmp.eq.s32.totalorder %s23, 5
      %p60 = por %p58, %p59
      %p62 = scmp.ne.s32.totalorder %s45, %s61
      %p63 = scmp.eq.s32.totalorder %s23, 0
      %p64 = por %p62, %p63
      %s65 = ssub.s32 %s24, %s36
      %p66 = scmp.eq.s32.totalorder %s65, 0
      %s68 = sadd.s32 %s67, 1
      %s69 = scalar_select %p66, %s67, %s68
      %p72 = pneg %p66
      %p73 = scmp.eq.s32.totalorder %s17, 5
      %p74 = por %p72, %p73
      %p75 = scmp.ne.s32.totalorder %s67, %s70
      %p76 = scmp.eq.s32.totalorder %s17, 0
      %p77 = por %p75, %p76
      %p78 = scmp.ne.s32.totalorder %s67, %s70
      %p79 = scmp.eq.s32.totalorder %s22, 5
      %p80 = por %p78, %p79
      %p81 = scmp.ne.s32.totalorder %s70, %s71
      %p82 = scmp.eq.s32.totalorder %s22, 0
      %p83 = por %p81, %p82
      %p84 = scmp.ne.s32.totalorder %s70, %s71
      %p85 = scmp.eq.s32.totalorder %s23, 5
      %p86 = por %p84, %p85
      %p88 = scmp.ne.s32.totalorder %s71, %s87
      %p89 = scmp.eq.s32.totalorder %s23, 0
      %p90 = por %p88, %p89
      %s91 = ssub.s32 %s24, %s36
      %s92 = ssub.s32 %s25, %s32
      %s93 = sor.u32 %s91, %s92
      %p94 = scmp.eq.s32.totalorder %s93, 0
      %s96 = sadd.s32 %s95, 1
      %s97 = scalar_select %p94, %s95, %s96
      %p100 = pneg %p94
      %p101 = scmp.eq.s32.totalorder %s17, 5
      %p102 = por %p100, %p101
      %p103 = scmp.ne.s32.totalorder %s95, %s98
      %p104 = scmp.eq.s32.totalorder %s17, 0
      %p105 = por %p103, %p104
      %p106 = scmp.ne.s32.totalorder %s95, %s98
      %p107 = scmp.eq.s32.totalorder %s22, 5
      %p108 = por %p106, %p107
      %p109 = scmp.ne.s32.totalorder %s98, %s99
      %p110 = scmp.eq.s32.totalorder %s22, 0
      %p111 = por %p109, %p110
      %p112 = scmp.ne.s32.totalorder %s98, %s99
      %p113 = scmp.eq.s32.totalorder %s23, 5
      %p114 = por %p112, %p113
      %p116 = scmp.ne.s32.totalorder %s99, %s115
      %p117 = scmp.eq.s32.totalorder %s23, 0
      %p118 = por %p116, %p117
      %p119 = scmp.le.s32.totalorder 1, %s17
      %p120 = scmp.lt.s32.totalorder %s17, 7
      %p121 = pnand %p119, %p120
      %p122 = pneg %p121
      // Predicated region
      $region9: #{tpu_custom_call.1} parent=5 // pred_check
        _
      $region10: #{tpu_custom_call.1} parent=5 // pred_check_branch
        %124 = sbr.rel (%p121) target = $region12
      $region11: #{tpu_custom_call.1} parent=5 // pred_region
        %s125 = ssub.s32 %s17, 1
      $region12: #{tpu_custom_call.1} parent=5 // pred_fallthru
        _
      %p126 = scmp.lt.s32.totalorder %s17, 6
      // Predicated region
      $region13: #{tpu_custom_call.1} parent=5 // pred_check
        %p127 = pneg %p126
      $region14: #{tpu_custom_call.1} parent=5 // pred_check_branch
        %129 = sbr.rel (%p127) target = $region16
      $region15: #{tpu_custom_call.1} parent=5 // pred_region
        // Predicated region
        $region17: #{tpu_custom_call.1} parent=15 // pred_check
          %p130 = pneg %p51
        $region18: #{tpu_custom_call.1} parent=15 // pred_check_branch
          %132 = sbr.rel (%p130) target = $region20
        $region19: #{tpu_custom_call.1} parent=15 // pred_region
          %s133 = sand.u32 %s41, 1
          %s134 = scalar_lea.sflag [#allocation3], %s133
          %s135 = sand.u32 %s41, 1
          %s136 = smul.addr %s135, 64
          %s137 = scalar_lea.vmem [#allocation2], %s136
          %s138 = smul.u32 16, %s25
          %s140 = ssub.s32 1024, 1024
          %141 = vsyncadd %s134, %s140
          %s142 = smul.addr %s24, 32
          %s143 = sadd.s32 %s138, %s142
          %s144 = smul.addr %s143, 64
          %s145 = scalar_lea.hbm %s0, %s144
          %s146 = sshll.u32 %s137, 4
          %s147 = int_to_ptr.vmem [resolvable:$true] %s146
          %152 = dma.hbm_to_vmem [thread:$0]  %s145, 1024, %s147, %s134, 64, 64, 4
        $region20: #{tpu_custom_call.1} parent=15 // pred_fallthru
          _
        // Predicated region
        $region21: #{tpu_custom_call.1} parent=15 // pred_check
          %p153 = pneg %p77
        $region22: #{tpu_custom_call.1} parent=15 // pred_check_branch
          %155 = sbr.rel (%p153) target = $region24
        $region23: #{tpu_custom_call.1} parent=15 // pred_region
          %s156 = sand.u32 %s67, 1
          %s157 = scalar_lea.sflag [#allocation6], %s156
          %s158 = sand.u32 %s67, 1
          %s159 = smul.addr %s158, 32
          %s160 = scalar_lea.vmem [#allocation5], %s159
          %s162 = ssub.s32 512, 512
          %163 = vsyncadd %s157, %s162
          %s164 = smul.addr %s24, 8
          %s165 = smul.addr %s164, 64
          %s166 = scalar_lea.hbm %s1, %s165
          %s167 = sshll.u32 %s160, 4
          %s168 = int_to_ptr.vmem [resolvable:$true] %s167
          %173 = dma.hbm_to_vmem [thread:$0]  %s166, 512, %s168, %s157, 64, 64, 4
        $region24: #{tpu_custom_call.1} parent=15 // pred_fallthru
          _
      $region16: #{tpu_custom_call.1} parent=5 // pred_fallthru
        _
      %p174 = scmp.le.s32.totalorder 1, %s17
      %p175 = scmp.lt.s32.totalorder %s17, 7
      %p176 = pnand %p174, %p175
      %p177 = pneg %p176
      // Predicated region
      $region25: #{tpu_custom_call.1} parent=5 // pred_check
        _
      $region26: #{tpu_custom_call.1} parent=5 // pred_check_branch
        %179 = sbr.rel (%p176) target = $region28
      $region27: #{tpu_custom_call.1} parent=5 // pred_region
        %s180 = ssub.s32 %s17, 1
        %s181 = sand.u32 %s44, 1
        %s182 = scalar_lea.sflag [#allocation3], %s181
        %s183 = sand.u32 %s44, 1
        %s184 = smul.addr %s183, 64
        %s185 = scalar_lea.vmem [#allocation2], %s184
        // Predicated region
        $region29: #{tpu_custom_call.1} parent=27 // pred_check
          %p186 = pneg %p57
        $region30: #{tpu_custom_call.1} parent=27 // pred_check_branch
          %188 = sbr.rel (%p186) target = $region32
        $region31: #{tpu_custom_call.1} parent=27 // pred_region
          %189 = dma.done %s182, 1024
        $region32: #{tpu_custom_call.1} parent=27 // pred_fallthru
          _
        %s190 = sand.u32 %s70, 1
        %s191 = scalar_lea.sflag [#allocation6], %s190
        %s192 = sand.u32 %s70, 1
        %s193 = smul.addr %s192, 32
        %s194 = scalar_lea.vmem [#allocation5], %s193
        // Predicated region
        $region33: #{tpu_custom_call.1} parent=27 // pred_check
          %p195 = pneg %p83
        $region34: #{tpu_custom_call.1} parent=27 // pred_check_branch
          %197 = sbr.rel (%p195) target = $region36
        $region35: #{tpu_custom_call.1} parent=27 // pred_region
          %198 = dma.done %s191, 512
        $region36: #{tpu_custom_call.1} parent=27 // pred_fallthru
          _
        %s199 = sand.u32 %s44, 1
        %s200 = scalar_lea.sflag [#allocation3], %s199
        %s201 = sand.u32 %s44, 1
        %s202 = smul.addr %s201, 64
        %s203 = scalar_lea.vmem [#allocation2], %s202
        %p204 = pneg %p57
        %p205 = pneg %p54
        %s206 = sand.u32 %s70, 1
        %s207 = scalar_lea.sflag [#allocation6], %s206
        %s208 = sand.u32 %s70, 1
        %s209 = smul.addr %s208, 32
        %s210 = scalar_lea.vmem [#allocation5], %s209
        %p211 = pneg %p83
        %p212 = pneg %p80
        %p213 = pneg %p111
        %p214 = pneg %p108
        %s215 = sand.u32 %s98, 1
        %s216 = scalar_lea.sflag [#allocation4], %s215
        %s217 = sand.u32 %s98, 1
        %s218 = smul.addr %s217, 64
        %s219 = scalar_lea.vmem [#allocation7], %s218
        %s220 = smul.u32 16, %s27
        %s221 = smul.u32 16, %s27
        %v223 = vld [vmem:[%s185] sm:$0xf]
        %v224 = vld [vmem:[%s185 + $0x4] sm:$0xf]
        %v225 = vld [vmem:[%s185 + $0x8] sm:$0xf]
        %v226 = vld [vmem:[%s185 + $0xc] sm:$0xf]
        %v227 = vld [vmem:[%s185 + $0x10] sm:$0xf]
        %v228 = vld [vmem:[%s185 + $0x14] sm:$0xf]
        %v229 = vld [vmem:[%s185 + $0x18] sm:$0xf]
        %v230 = vld [vmem:[%s185 + $0x1c] sm:$0xf]
        %v231 = vld [vmem:[%s185 + $0x20] sm:$0xf]
        %v232 = vld [vmem:[%s185 + $0x24] sm:$0xf]
        %v233 = vld [vmem:[%s185 + $0x28] sm:$0xf]
        %v234 = vld [vmem:[%s185 + $0x2c] sm:$0xf]
        %v235 = vld [vmem:[%s185 + $0x30] sm:$0xf]
        %v236 = vld [vmem:[%s185 + $0x34] sm:$0xf]
        %v237 = vld [vmem:[%s185 + $0x38] sm:$0xf]
        %v238 = vld [vmem:[%s185 + $0x3c] sm:$0xf]
        %v239 = vld [vmem:[%s194] sm:$0xf]
        %v240 = vld [vmem:[%s194 + $0x4] sm:$0xf]
        %v241 = vld [vmem:[%s194 + $0x8] sm:$0xf]
        %v242 = vld [vmem:[%s194 + $0xc] sm:$0xf]
        %v243 = vld [vmem:[%s194 + $0x10] sm:$0xf]
        %v244 = vld [vmem:[%s194 + $0x14] sm:$0xf]
        %v245 = vld [vmem:[%s194 + $0x18] sm:$0xf]
        %v246 = vld [vmem:[%s194 + $0x1c] sm:$0xf]
        %v263 = vunpack.c.l.b16 %v223
        %v264 = vunpack.c.l.b16 %v224
        %v265 = vunpack.c.l.b16 %v225
        %v266 = vunpack.c.l.b16 %v226
        %v267 = vunpack.c.l.b16 %v227
        %v268 = vunpack.c.l.b16 %v228
        %v269 = vunpack.c.l.b16 %v229
        %v270 = vunpack.c.l.b16 %v230
        %v271 = vunpack.c.l.b16 %v231
        %v272 = vunpack.c.l.b16 %v232
        %v273 = vunpack.c.l.b16 %v233
        %v274 = vunpack.c.l.b16 %v234
        %v275 = vunpack.c.l.b16 %v235
        %v276 = vunpack.c.l.b16 %v236
        %v277 = vunpack.c.l.b16 %v237
        %v278 = vunpack.c.l.b16 %v238
        %v279 = vpack.c.b16 %v264, %v263
        %v280 = vpack.c.b16 %v266, %v265
        %v281 = vpack.c.b16 %v268, %v267
        %v282 = vpack.c.b16 %v270, %v269
        %v283 = vpack.c.b16 %v272, %v271
        %v284 = vpack.c.b16 %v274, %v273
        %v285 = vpack.c.b16 %v276, %v275
        %v286 = vpack.c.b16 %v278, %v277
        %v295 = vunpack.c.l.b16 %v239
        %v296 = vunpack.c.l.b16 %v240
        %v297 = vunpack.c.l.b16 %v241
        %v298 = vunpack.c.l.b16 %v242
        %v299 = vunpack.c.l.b16 %v243
        %v300 = vunpack.c.l.b16 %v244
        %v301 = vunpack.c.l.b16 %v245
        %v302 = vunpack.c.l.b16 %v246
        %v303 = vpack.c.b16 %v296, %v295
        %v304 = vpack.c.b16 %v298, %v297
        %v305 = vpack.c.b16 %v300, %v299
        %v306 = vpack.c.b16 %v302, %v301
        %vm311 = vcmask 523264
        %v313 = vsel %vm311, %v279, 0
        %v316 = vsel %vm311, %v280, 0
        %v319 = vsel %vm311, %v281, 0
        %v322 = vsel %vm311, %v282, 0
        %v325 = vsel %vm311, %v283, 0
        %v328 = vsel %vm311, %v284, 0
        %v331 = vsel %vm311, %v285, 0
        %v334 = vsel %vm311, %v286, 0
        %336 = vmatprep.subr.bf16.mxu0 0
        %337 = vmatpush1.bf16.msra.mxu0 %v303
        %338 = vmatprep.subr.bf16.mxu0 0
        %339 = vmatpush1.bf16.msra.mxu0 %v304
        %340 = vmatprep.subr.bf16.mxu0 0
        %341 = vmatpush1.bf16.msra.mxu0 %v305
        %342 = vmatprep.subr.bf16.mxu0 0
        %343 = vmatpush1.bf16.msra.mxu0 %v306
        %344 = vmatprep.subr.bf16.mxu0 0
        %345 = vmatpush1.bf16.msra.mxu0 0
        %346 = vmatprep.subr.bf16.mxu0 0
        %347 = vmatpush1.bf16.msra.mxu0 0
        %348 = vmatprep.subr.bf16.mxu0 0
        %349 = vmatpush1.bf16.msra.mxu0 0
        %350 = vmatprep.subr.bf16.mxu0 0
        %351 = vmatpush1.bf16.msra.mxu0 0
        %352 = vmatprep.subr.bf16.mxu0 0
        %353 = vmatpush1.bf16.msra.mxu0 0
        %354 = vmatprep.subr.bf16.mxu0 0
        %355 = vmatpush1.bf16.msra.mxu0 0
        %356 = vmatprep.subr.bf16.mxu0 0
        %357 = vmatpush1.bf16.msra.mxu0 0
        %358 = vmatprep.subr.bf16.mxu0 0
        %359 = vmatpush1.bf16.msra.mxu0 0
        %360 = vmatprep.subr.bf16.mxu0 0
        %361 = vmatpush1.bf16.msra.mxu0 0
        %362 = vmatprep.subr.bf16.mxu0 0
        %363 = vmatpush1.bf16.msra.mxu0 0
        %364 = vmatprep.subr.bf16.mxu0 0
        %365 = vmatpush1.bf16.msra.mxu0 0
        %366 = vmatprep.subr.bf16.mxu0 0
        %367 = vmatpush1.bf16.msra.mxu0 0
        %368 = vmatprep.mubr.bf16.mxu0 0
        %369 = vmatmul.mubr.bf16.gmra.mrb[0].mxu0 %v313
        %v370 = vpop.f32.mrb[0].mxu0
        %v371 = vadd.f32 0.0, %v370
        %v372 = vpop.f32.mrb[0].mxu0
        %v373 = vpop.f32.mrb[0].mxu0
        %v374 = vadd.f32 0.0, %v373
        %v375 = vpop.f32.mrb[0].mxu0
        %376 = vmatprep.mubr.bf16.mxu0 0
        %377 = vmatmul.mubr.bf16.gmra.mrb[0].mxu0 %v316
        %v378 = vpop.f32.mrb[0].mxu0
        %v379 = vadd.f32 0.0, %v378
        %v380 = vpop.f32.mrb[0].mxu0
        %v381 = vpop.f32.mrb[0].mxu0
        %v382 = vadd.f32 0.0, %v381
        %v383 = vpop.f32.mrb[0].mxu0
        %384 = vmatprep.mubr.bf16.mxu0 0
        %385 = vmatmul.mubr.bf16.gmra.mrb[0].mxu0 %v319
        %v386 = vpop.f32.mrb[0].mxu0
        %v387 = vadd.f32 0.0, %v386
        %v388 = vpop.f32.mrb[0].mxu0
        %v389 = vpop.f32.mrb[0].mxu0
        %v390 = vadd.f32 0.0, %v389
        %v391 = vpop.f32.mrb[0].mxu0
        %392 = vmatprep.mubr.bf16.mxu0 0
        %393 = vmatmul.mubr.bf16.gmra.mrb[0].mxu0 %v322
        %v394 = vpop.f32.mrb[0].mxu0
        %v395 = vadd.f32 0.0, %v394
        %v396 = vpop.f32.mrb[0].mxu0
        %v397 = vpop.f32.mrb[0].mxu0
        %v398 = vadd.f32 0.0, %v397
        %v399 = vpop.f32.mrb[0].mxu0
        %400 = vmatprep.mubr.bf16.mxu0 0
        %401 = vmatmul.mubr.bf16.gmra.mrb[0].mxu0 %v325
        %v402 = vpop.f32.mrb[0].mxu0
        %v403 = vadd.f32 0.0, %v402
        %v404 = vpop.f32.mrb[0].mxu0
        %v405 = vpop.f32.mrb[0].mxu0
        %v406 = vadd.f32 0.0, %v405
        %v407 = vpop.f32.mrb[0].mxu0
        %408 = vmatprep.mubr.bf16.mxu0 0
        %409 = vmatmul.mubr.bf16.gmra.mrb[0].mxu0 %v328
        %v410 = vpop.f32.mrb[0].mxu0
        %v411 = vadd.f32 0.0, %v410
        %v412 = vpop.f32.mrb[0].mxu0
        %v413 = vpop.f32.mrb[0].mxu0
        %v414 = vadd.f32 0.0, %v413
        %v415 = vpop.f32.mrb[0].mxu0
        %416 = vmatprep.mubr.bf16.mxu0 0
        %417 = vmatmul.mubr.bf16.gmra.mrb[0].mxu0 %v331
        %v418 = vpop.f32.mrb[0].mxu0
        %v419 = vadd.f32 0.0, %v418
        %v420 = vpop.f32.mrb[0].mxu0
        %v421 = vpop.f32.mrb[0].mxu0
        %v422 = vadd.f32 0.0, %v421
        %v423 = vpop.f32.mrb[0].mxu0
        %424 = vmatprep.mubr.bf16.mxu0 0
        %425 = vmatmul.mubr.bf16.gmra.mrb[0].mxu0 %v334
        %v426 = vpop.f32.mrb[0].mxu0
        %v427 = vadd.f32 0.0, %v426
        %v428 = vpop.f32.mrb[0].mxu0
        %v429 = vpop.f32.mrb[0].mxu0
        %v430 = vadd.f32 0.0, %v429
        %v431 = vpop.f32.mrb[0].mxu0
        %432 = vdwg.mxu0
        %v433 = vpack.c.bf16 %v374, %v371
        %v434 = vpack.c.bf16 %v382, %v379
        %v435 = vpack.c.bf16 %v390, %v387
        %v436 = vpack.c.bf16 %v398, %v395
        %v437 = vpack.c.bf16 %v406, %v403
        %v438 = vpack.c.bf16 %v414, %v411
        %v439 = vpack.c.bf16 %v422, %v419
        %v440 = vpack.c.bf16 %v430, %v427
        %v449 = vunpack.c.l.b16 %v433
        %v450 = vunpack.c.h.b16 %v433
        %v451 = vunpack.c.l.b16 %v434
        %v452 = vunpack.c.h.b16 %v434
        %v453 = vunpack.c.l.b16 %v435
        %v454 = vunpack.c.h.b16 %v435
        %v455 = vunpack.c.l.b16 %v436
        %v456 = vunpack.c.h.b16 %v436
        %v457 = vunpack.c.l.b16 %v437
        %v458 = vunpack.c.h.b16 %v437
        %v459 = vunpack.c.l.b16 %v438
        %v460 = vunpack.c.h.b16 %v438
        %v461 = vunpack.c.l.b16 %v439
        %v462 = vunpack.c.h.b16 %v439
        %v463 = vunpack.c.l.b16 %v440
        %v464 = vunpack.c.h.b16 %v440
        %v465 = vpack.c.b16 %v449, %v449
        %v466 = vpack.c.b16 %v450, %v450
        %v467 = vpack.c.b16 %v451, %v451
        %v468 = vpack.c.b16 %v452, %v452
        %v469 = vpack.c.b16 %v453, %v453
        %v470 = vpack.c.b16 %v454, %v454
        %v471 = vpack.c.b16 %v455, %v455
        %v472 = vpack.c.b16 %v456, %v456
        %v473 = vpack.c.b16 %v457, %v457
        %v474 = vpack.c.b16 %v458, %v458
        %v475 = vpack.c.b16 %v459, %v459
        %v476 = vpack.c.b16 %v460, %v460
        %v477 = vpack.c.b16 %v461, %v461
        %v478 = vpack.c.b16 %v462, %v462
        %v479 = vpack.c.b16 %v463, %v463
        %v480 = vpack.c.b16 %v464, %v464
        %vm497 = vcmask 519168
        %498 = vst.msk [vmem:[%s219] sm:$0xf] %vm497, %v465
        %499 = vst.msk [vmem:[%s219 + $0x4] sm:$0xf] %vm497, %v466
        %500 = vst.msk [vmem:[%s219 + $0x8] sm:$0xf] %vm497, %v467
        %501 = vst.msk [vmem:[%s219 + $0xc] sm:$0xf] %vm497, %v468
        %502 = vst.msk [vmem:[%s219 + $0x10] sm:$0xf] %vm497, %v469
        %503 = vst.msk [vmem:[%s219 + $0x14] sm:$0xf] %vm497, %v470
        %504 = vst.msk [vmem:[%s219 + $0x18] sm:$0xf] %vm497, %v471
        %505 = vst.msk [vmem:[%s219 + $0x1c] sm:$0xf] %vm497, %v472
        %506 = vst.msk [vmem:[%s219 + $0x20] sm:$0xf] %vm497, %v473
        %507 = vst.msk [vmem:[%s219 + $0x24] sm:$0xf] %vm497, %v474
        %508 = vst.msk [vmem:[%s219 + $0x28] sm:$0xf] %vm497, %v475
        %509 = vst.msk [vmem:[%s219 + $0x2c] sm:$0xf] %vm497, %v476
        %510 = vst.msk [vmem:[%s219 + $0x30] sm:$0xf] %vm497, %v477
        %511 = vst.msk [vmem:[%s219 + $0x34] sm:$0xf] %vm497, %v478
        %512 = vst.msk [vmem:[%s219 + $0x38] sm:$0xf] %vm497, %v479
        %513 = vst.msk [vmem:[%s219 + $0x3c] sm:$0xf] %vm497, %v480
        %s514 = sand.u32 %s98, 1
        %s515 = scalar_lea.sflag [#allocation4], %s514
        %s516 = sand.u32 %s98, 1
        %s517 = smul.addr %s516, 64
        %s518 = scalar_lea.vmem [#allocation7], %s517
        // Predicated region
        $region37: #{tpu_custom_call.1} parent=27 // pred_check
          %p519 = pneg %p108
        $region38: #{tpu_custom_call.1} parent=27 // pred_check_branch
          %521 = sbr.rel (%p519) target = $region40
        $region39: #{tpu_custom_call.1} parent=27 // pred_region
          %s522 = smul.u32 16, %s27
          %s524 = ssub.s32 1024, 1024
          %525 = vsyncadd %s515, %s524
          %s526 = smul.addr %s26, 32
          %s527 = sadd.s32 %s522, %s526
          %s528 = smul.addr %s527, 64
          %s529 = scalar_lea.hbm %s2, %s528
          %s530 = sshll.u32 %s518, 4
          %s531 = int_to_ptr.vmem [resolvable:$true] %s530
          %536 = dma.vmem_to_hbm [thread:$0]  %s531, 1024, %s529, %s515, 64, 64, 4
        $region40: #{tpu_custom_call.1} parent=27 // pred_fallthru
          _
      $region28: #{tpu_custom_call.1} parent=5 // pred_fallthru
        _
      %p537 = scmp.le.s32.totalorder 2, %s17
      // Predicated region
      $region41: #{tpu_custom_call.1} parent=5 // pred_check
        %p538 = pneg %p537
      $region42: #{tpu_custom_call.1} parent=5 // pred_check_branch
        %540 = sbr.rel (%p538) target = $region44
      $region43: #{tpu_custom_call.1} parent=5 // pred_region
        %s541 = ssub.s32 %s17, 2
        // Predicated region
        $region45: #{tpu_custom_call.1} parent=43 // pred_check
          %p542 = pneg %p114
        $region46: #{tpu_custom_call.1} parent=43 // pred_check_branch
          %544 = sbr.rel (%p542) target = $region48
        $region47: #{tpu_custom_call.1} parent=43 // pred_region
          %s545 = sand.u32 %s99, 1
          %s546 = scalar_lea.sflag [#allocation4], %s545
          %s547 = sand.u32 %s99, 1
          %s548 = smul.addr %s547, 64
          %s549 = scalar_lea.vmem [#allocation7], %s548
          %550 = dma.done %s546, 1024
        $region48: #{tpu_custom_call.1} parent=43 // pred_fallthru
          _
      $region44: #{tpu_custom_call.1} parent=5 // pred_fallthru
        _
    $region6: #{tpu_custom_call.1} parent=1 // loop_footer
      %s21 = sadd.s32 1, %s17
    $region7: #{tpu_custom_call.1} parent=1 // loop_footer_branch
      %16 = sbr.rel target = $region3
    $region8: #{tpu_custom_call.1} parent=1 // loop_exit
      _
    %551 = vsyncpa [#allocation3], 1
    %s552 = scalar_lea.sflag [#allocation3], 1
    %553 = vsyncpa %s552, 1
    %554 = vsyncpa [#allocation6], 1
    %s555 = scalar_lea.sflag [#allocation6], 1
    %556 = vsyncpa %s555, 1
    %557 = vsyncpa [#allocation4], 1
    %s558 = scalar_lea.sflag [#allocation4], 1
    %559 = vsyncpa %s558, 1

</llo_original>
